<compile_context>
chip_gen: v5e
topology: v5e:2x2
jax: 0.10.0
libtpu: 0.0.40
codegen_flags: <defaults>
</compile_context>

<pallas_src>
import math

import jax
import jax.numpy as jnp
from jax.experimental import pallas as pl
from jax.experimental.pallas import tpu as pltpu

_MIB = 1024 * 1024


# ---------------------------------------------------------------------------
# Hardware-aware budgets
# ---------------------------------------------------------------------------
def _vmem_capacity_bytes():
    """Physical VMEM per core; used to generation-gate tile budgets."""
    try:
        info = pltpu.get_tpu_info()
        cap = getattr(info, "vmem_capacity_bytes", None)
        if cap:
            return int(cap)
    except Exception:
        pass
    return 64 * _MIB  # conservative (v7x-class) fallback


def _budgets():
    cap = _vmem_capacity_bytes()
    # Per-VMEM-buffer byte budget.  v5e/v6e (128 MiB VMEM) afford 1024-class
    # f32 tiles; v7x (64 MiB) is capped at half so the 4 live buffers
    # (in + out, double-buffered) stay well inside the scoped limit.
    fast_buf = 4 * _MIB if cap >= 96 * _MIB else 2 * _MIB
    gen_buf = 2 * _MIB
    vmem_limit = int(min(64 * _MIB, cap // 2))
    return fast_buf, gen_buf, vmem_limit


def _compiler_params(n_axes, vmem_limit):
    return pltpu.CompilerParams(
        dimension_semantics=("parallel",) * n_axes,
        vmem_limit_bytes=vmem_limit)


def _cost(nbytes):
    # Pure copy: no flops, 1x read + 1x write of the array.
    return pl.CostEstimate(flops=0, transcendentals=0, bytes_accessed=2 * nbytes)


def _aligned_cap(dim, cap, align):
    """Largest legal block extent: a multiple of `align` <= cap, or the full
    dim (always legal) when the dim already fits / rounding would exceed it."""
    if dim <= cap:
        return dim
    return min(dim, max(align, (cap // align) * align))


def _sublane_align(itemsize):
    # Native packed sublane tile: f32 -> 8, bf16 -> 16, int8/fp8 -> 32.
    return max(8, 32 // max(itemsize, 1))


# ---------------------------------------------------------------------------
# Fast path: swap the trailing two axes
# ---------------------------------------------------------------------------
def _swap2d_kernel(x_ref, o_ref):
    # (tm, tn) -> (tn, tm) 2-D XLU transpose.
    o_ref[...] = x_ref[...].T


def _swap2d_batched_kernel(x_ref, o_ref):
    # (tp, M, N) -> (tp, N, M); used for tiny planes batched over the lead axis.
    x = x_ref[...]
    if x.shape[0] == 1:
        o_ref[0] = x[0].T
    else:
        o_ref[...] = jnp.swapaxes(x, 1, 2)


def _transpose_last_two(x3, fast_buf, vmem_limit):
    P, M, N = x3.shape
    itemsize = x3.dtype.itemsize
    plane = M * N * itemsize
    cost = _cost(x3.size * itemsize)
    out_shape = jax.ShapeDtypeStruct((P, N, M), x3.dtype)

    if plane <= 256 * 1024:
        # Tiny planes: batch the leading axis into the block so each grid step
        # moves ~1 MiB instead of a few KiB (0.35 us/step overhead otherwise
        # dominates).  Keep >= 2 steps when P >= 2 so v7x's 2 TCs both work.
        tp = max(1, min(P, _MIB // max(plane, 1)))
        if P >= 2:
            tp = min(tp, pl.cdiv(P, 2))
        grid = (pl.cdiv(P, tp),)
        return pl.pallas_call(
            _swap2d_batched_kernel,
            out_shape=out_shape,
            grid_spec=pltpu.PrefetchScalarGridSpec(
                num_scalar_prefetch=0,
                grid=grid,
                in_specs=[pl.BlockSpec((tp, M, N), lambda p: (p, 0, 0))],
                out_specs=pl.BlockSpec((tp, N, M), lambda p: (p, 0, 0))),
            compiler_params=_compiler_params(1, vmem_limit),
            cost_estimate=cost,
        )(x3)

    # Large planes: fixed 128-aligned tiles within the per-buffer budget;
    # cdiv grid handles ragged edges (garbage-padded reads only ever map to
    # masked out-of-bounds writes, so results stay exact).
    elems = max(128 * 128, fast_buf // itemsize)
    side = max(128, (int(math.isqrt(elems)) // 128) * 128)
    tm = _aligned_cap(M, side, 128)
    tn = _aligned_cap(N, side, 128)
    tm = _aligned_cap(M, max(side, elems // max(tn, 1)), 128)
    tn = _aligned_cap(N, max(128, elems // max(tm, 1)), 128)
    grid = (P, pl.cdiv(M, tm), pl.cdiv(N, tn))
    return pl.pallas_call(
        _swap2d_kernel,
        out_shape=out_shape,
        grid_spec=pltpu.PrefetchScalarGridSpec(
            num_scalar_prefetch=0,
            grid=grid,
            in_specs=[pl.BlockSpec((None, tm, tn), lambda p, i, j: (p, i, j))],
            out_specs=pl.BlockSpec((None, tn, tm), lambda p, i, j: (p, j, i))),
        compiler_params=_compiler_params(3, vmem_limit),
        cost_estimate=cost,
    )(x3)


# ---------------------------------------------------------------------------
# General path, T > 1: x (P, A, Mid, B, T) -> (P, B, Mid, A, T)
# ---------------------------------------------------------------------------
def _swap_gb_kernel(x_ref, o_ref):
    # x: (ta, tmid, tb, tt) ; o: (tb, tmid, ta, tt).  The lane axis (tt) is
    # untouched; each mid-slice is a (ta, tb, tt) -> (tb, ta, tt) relayout.
    # TODO(synk): a pure-copy variant (B squeezed out of the block, permutation
    # entirely in the index_maps) would remove this in-VMEM relayout, but a
    # squeezed second-minor block dim conflicts with the (8,128) block rule.
    tmid = x_ref.shape[1]
    for m in range(tmid):  # tmid is capped at 16 -> short static unroll
        o_ref[:, m] = jnp.swapaxes(x_ref[:, m], 0, 1)


def _transpose_general_tn(x5, gen_buf, vmem_limit):
    P, A, Mid, B, T = x5.shape
    itemsize = x5.dtype.itemsize
    align = _sublane_align(itemsize)
    elems = max(1, gen_buf // itemsize)

    # Trailing lane axis: keep full unless it alone would blow the budget.
    tt = _aligned_cap(T, max(128, elems // (align * align)), 128)
    rem = max(1, elems // tt)
    # Split the remaining budget between A (contiguous output runs) and B
    # (contiguous input runs); Mid only boosts payload.
    side = max(align, int(math.isqrt(rem)))
    ta = _aligned_cap(A, side, align)
    tb = _aligned_cap(B, max(align, rem // max(ta, 1)), align)
    ta = _aligned_cap(A, max(align, rem // max(tb, 1)), align)
    tmid = min(Mid, max(1, rem // max(ta * tb, 1)), 16)

    grid = (P, pl.cdiv(Mid, tmid), pl.cdiv(A, ta), pl.cdiv(B, tb),
            pl.cdiv(T, tt))
    return pl.pallas_call(
        _swap_gb_kernel,
        out_shape=jax.ShapeDtypeStruct((P, B, Mid, A, T), x5.dtype),
        grid_spec=pltpu.PrefetchScalarGridSpec(
            num_scalar_prefetch=0,
            grid=grid,
            in_specs=[pl.BlockSpec((None, ta, tmid, tb, tt),
                                   lambda p, m, i, j, t: (p, i, m, j, t))],
            out_specs=pl.BlockSpec((None, tb, tmid, ta, tt),
                                   lambda p, m, i, j, t: (p, j, m, i, t))),
        compiler_params=_compiler_params(5, vmem_limit),
        cost_estimate=_cost(x5.size * itemsize),
    )(x5)


# ---------------------------------------------------------------------------
# General path, T == 1: x (P, A, Mid, B) -> (P, B, Mid, A)
# ---------------------------------------------------------------------------
def _swap_ga_kernel(x_ref, o_ref):
    # x: (ta, tmid, tb) ; o: (tb, tmid, ta).  The lane axis swaps A <-> B, so
    # each mid-slice is a genuine 2-D XLU transpose; both lane dims are kept
    # 128-aligned (or the full dim) so loads/stores stay lane-dense.
    tmid = x_ref.shape[1]
    for m in range(tmid):  # tmid is capped -> short static unroll
        o_ref[:, m] = x_ref[:, m].T


def _transpose_general_t1(x4, gen_buf, vmem_limit):
    P, A, Mid, B = x4.shape
    itemsize = x4.dtype.itemsize
    align = _sublane_align(itemsize)
    elems = max(1, gen_buf // itemsize)

    ta = _aligned_cap(A, 256, 128)       # output lane axis
    tb = _aligned_cap(B, 256, 128)       # input lane axis
    tmid = _aligned_cap(Mid, max(1, elems // max(ta * tb, 1)), align)
    tmid = min(tmid, max(16, align))     # bound the static in-kernel unroll
    ta = _aligned_cap(A, max(128, elems // max(tb * tmid, 1)), 128)
    tb = _aligned_cap(B, max(128, elems // max(ta * tmid, 1)), 128)

    grid = (P, pl.cdiv(Mid, tmid), pl.cdiv(A, ta), pl.cdiv(B, tb))
    return pl.pallas_call(
        _swap_ga_kernel,
        out_shape=jax.ShapeDtypeStruct((P, B, Mid, A), x4.dtype),
        grid_spec=pltpu.PrefetchScalarGridSpec(
            num_scalar_prefetch=0,
            grid=grid,
            in_specs=[pl.BlockSpec((None, ta, tmid, tb),
                                   lambda p, m, i, j: (p, i, m, j))],
            out_specs=pl.BlockSpec((None, tb, tmid, ta),
                                   lambda p, m, i, j: (p, j, m, i))),
        compiler_params=_compiler_params(4, vmem_limit),
        cost_estimate=_cost(x4.size * itemsize),
    )(x4)


# ---------------------------------------------------------------------------
# Public wrapper: torch.transpose(x, dim0, dim1)
# ---------------------------------------------------------------------------
def transpose_pallas(x, dim0, dim1):
    x = jnp.asarray(x)
    nd = x.ndim
    a = dim0 % nd
    b = dim1 % nd
    if a == b:
        return x
    a, b = (a, b) if a < b else (b, a)

    out_shape = list(x.shape)
    out_shape[a], out_shape[b] = x.shape[b], x.shape[a]

    if x.size == 0:  # degenerate: nothing to move
        return jnp.swapaxes(x, a, b)

    fast_buf, gen_buf, vmem_limit = _budgets()

    shape = x.shape
    P = math.prod(shape[:a])
    A = shape[a]
    Mid = math.prod(shape[a + 1:b])
    B = shape[b]
    T = math.prod(shape[b + 1:])

    if Mid == 1 and T == 1:
        # Trailing-pair swap (or all in-between axes are size 1).
        y = _transpose_last_two(x.reshape(P, A, B), fast_buf, vmem_limit)
    elif T == 1:
        # Last axis is one of the swapped axes (non-adjacent pair).
        y = _transpose_general_t1(x.reshape(P, A, Mid, B), gen_buf, vmem_limit)
    else:
        # Trailing axes untouched by the swap.
        y = _transpose_general_tn(x.reshape(P, A, Mid, B, T), gen_buf,
                                  vmem_limit)
    return y.reshape(out_shape)


if __name__ == "__main__":
    key = jax.random.PRNGKey(0)
    checks = []

    # 1) ICCT usage: Transpose(1, 2) on (batch, seq, hidden) — small shapes.
    x1 = jax.random.normal(key, (2, 8, 32), dtype=jnp.float32)
    checks.append((transpose_pallas(x1, 1, 2), jnp.swapaxes(x1, 1, 2)))

    # 2) 128-aligned shape — exercises the tiled lane/sublane fast path.
    x2 = jax.random.normal(jax.random.fold_in(key, 1), (1, 1024, 256),
                           dtype=jnp.float32)
    checks.append((transpose_pallas(x2, -2, -1), jnp.swapaxes(x2, -2, -1)))

    # 3) bf16 dtype on the fast path.
    x3 = jax.random.normal(jax.random.fold_in(key, 2),
                           (2, 8, 32)).astype(jnp.bfloat16)
    checks.append((transpose_pallas(x3, 2, 1), jnp.swapaxes(x3, 2, 1)))

    # 4) General path: swapped axes are not the trailing pair (T > 1).
    x4 = jax.random.normal(jax.random.fold_in(key, 3), (2, 4, 6, 32),
                           dtype=jnp.float32)
    checks.append((transpose_pallas(x4, 1, 2), jnp.swapaxes(x4, 1, 2)))

    # 5) General path: last axis involved but non-adjacent (T == 1, Mid > 1).
    x5 = jax.random.normal(jax.random.fold_in(key, 4), (4, 6, 32),
                           dtype=jnp.float32)
    checks.append((transpose_pallas(x5, 0, 2), jnp.swapaxes(x5, 0, 2)))

    for got, ref in checks:
        got = jax.block_until_ready(got)
        assert got.shape == ref.shape, (got.shape, ref.shape)
        assert bool(jnp.array_equal(got, ref)), "mismatch vs reference transpose"

    print("KERNEL_OK")
</pallas_src>

<mosaic_0001>
module attributes {stable_mosaic.version = 11 : i64} {
  func.func @_swap2d_batched_kernel(%arg0: i32, %arg1: memref<1x8x32xf32, #tpu.memory_space<vmem>>, %arg2: memref<1x32x8xf32, #tpu.memory_space<vmem>>) attributes {dimension_semantics = [#tpu.dimension_semantics<parallel>], iteration_bounds = array<i64: 2>, scalar_prefetch = 0 : i64, scratch_operands = 0 : i64, tpu.core_type = #tpu.core_type<tc>, window_params = [{transform_indices = @transform_0, window_bounds = array<i64: 1, 8, 32>}, {transform_indices = @transform_1, window_bounds = array<i64: 1, 32, 8>}]} {
    %c0 = arith.constant 0 : index
    %c0_0 = arith.constant 0 : index
    %c0_1 = arith.constant 0 : index
    %0 = vector.load %arg1[%c0, %c0_0, %c0_1] : memref<1x8x32xf32, #tpu.memory_space<vmem>>, vector<1x8x32xf32>
    %1 = vector.shape_cast %0 : vector<1x8x32xf32> to vector<8x32xf32>
    %2 = tpu.transpose %1, [1, 0] : vector<8x32xf32> -> vector<32x8xf32>
    %c0_2 = arith.constant 0 : index
    %c0_3 = arith.constant 0 : index
    %c0_4 = arith.constant 0 : index
    %3 = vector.load %arg2[%c0_2, %c0_3, %c0_4] : memref<1x32x8xf32, #tpu.memory_space<vmem>>, vector<1x32x8xf32>
    %4 = vector.shape_cast %3 : vector<1x32x8xf32> to vector<32x8xf32>
    %5 = vector.shape_cast %2 : vector<32x8xf32> to vector<1x32x8xf32>
    tpu.vector_store %arg2[%c0_2, %c0_3, %c0_4], %5 {strides = array<i32>} : memref<1x32x8xf32, #tpu.memory_space<vmem>>, vector<1x32x8xf32>,
    return
  }
  func.func @transform_0(%arg0: i32) -> (i32, i32, i32) {
    %c0_i32 = arith.constant 0 : i32
    %c0_i32_0 = arith.constant 0 : i32
    %c0_i32_1 = arith.constant 0 : i32
    return %arg0, %c0_i32, %c0_i32_0 : i32, i32, i32
  }
  func.func @transform_1(%arg0: i32) -> (i32, i32, i32) {
    %c0_i32 = arith.constant 0 : i32
    %c0_i32_0 = arith.constant 0 : i32
    %c0_i32_1 = arith.constant 0 : i32
    return %arg0, %c0_i32, %c0_i32_0 : i32, i32, i32
  }
}

</mosaic_0001>

<llo_original>
// kernel: tpu_custom_call.1
$region0: #{tpu_custom_call.1}
  #allocation0 [shape = 'u32[]', space=smem, size = 0x4, offset = 0x4, fixed_abs, tag = 'smem constant byte address 0x4 - core index']
  #allocation1 [shape = 'u32[72,128]{1,0:T(1,128)}', space=vmem, size = 0x9000, scoped, tag = 'internal scratch']
  %s0 = inlined_call_operand.hbm [shape: f32[2,8,32], index: 0, kind: input, shape index: {}]
  %s1 = inlined_call_operand.vmem [shape: f32[2,32,8], index: 1, kind: output, shape index: {}]
  %s2 = sld [smem:[#allocation0]]
  $region41: #{tpu_custom_call.1} parent=0
    _
  %s4 = ssub.s32 1, %s2
  %s5 = scalar_select 0, %s4, %s2
  $region1: #{tpu_custom_call.1} parent=0
    #allocation2 [shape = 'u8[8192]{0}', space=vmem, size = 0x2000, scoped, tag = 'input window, operand 0']
    #allocation3 [shape = 's32[2]{0}', space=sflag, size = 0x8, scoped, tag = 'scoped memory for tpu_custom_call.1']
    %6 = vsyncpa [#allocation3], 0
    %s7 = scalar_lea.sflag [#allocation3], 1
    %8 = vsyncpa %s7, 0
    loop: start=0, step=1, limit=4
    $region2: #{tpu_custom_call.1} parent=1 // loop_pre_header
      _
    $region3: #{tpu_custom_call.1} parent=1 // loop_header
      %s10 = sphi 0, %s14
      %p11 = scmp.ge.s32.totalorder %s10, 4
      %s20 = sphi 0, %s22
      %s23 = sphi 0, %s20
      %s24 = sphi 0, %s23
      %s40 = sphi 0, %s24
      %s46 = sphi 0, %s48
      %s49 = sphi 0, %s46
      %s50 = sphi 0, %s49
      %s66 = sphi 0, %s50
    $region4: #{tpu_custom_call.1} parent=1 // loop_header_branch
      %13 = sbr.rel (%p11) target = $region8
    $region5: #{tpu_custom_call.1} parent=1 // loop_body
      %s15 = ssub.s32 %s10, 1
      %s16 = ssub.s32 %s10, 2
      %s17 = sadd.s32 %s10, 1
      %s18 = ssub.s32 %s10, %s17
      %p19 = scmp.eq.s32.totalorder %s18, 0
      %s21 = sadd.s32 %s20, 1
      %s22 = scalar_select %p19, %s20, %s21
      %p25 = pneg %p19
      %p26 = scmp.eq.s32.totalorder %s10, 1
      %p27 = por %p25, %p26
      %p28 = scmp.ne.s32.totalorder %s20, %s23
      %p29 = scmp.eq.s32.totalorder %s10, 0
      %p30 = por %p28, %p29
      %p31 = scmp.ne.s32.totalorder %s20, %s23
      %p32 = scmp.eq.s32.totalorder %s15, 1
      %p33 = por %p31, %p32
      %p34 = scmp.ne.s32.totalorder %s23, %s24
      %p35 = scmp.eq.s32.totalorder %s15, 0
      %p36 = por %p34, %p35
      %p37 = scmp.ne.s32.totalorder %s23, %s24
      %p38 = scmp.eq.s32.totalorder %s16, 1
      %p39 = por %p37, %p38
      %p41 = scmp.ne.s32.totalorder %s24, %s40
      %p42 = scmp.eq.s32.totalorder %s16, 0
      %p43 = por %p41, %p42
      %s44 = ssub.s32 %s10, %s17
      %p45 = scmp.eq.s32.totalorder %s44, 0
      %s47 = sadd.s32 %s46, 1
      %s48 = scalar_select %p45, %s46, %s47
      %p51 = pneg %p45
      %p52 = scmp.eq.s32.totalorder %s10, 1
      %p53 = por %p51, %p52
      %p54 = scmp.ne.s32.totalorder %s46, %s49
      %p55 = scmp.eq.s32.totalorder %s10, 0
      %p56 = por %p54, %p55
      %p57 = scmp.ne.s32.totalorder %s46, %s49
      %p58 = scmp.eq.s32.totalorder %s15, 1
      %p59 = por %p57, %p58
      %p60 = scmp.ne.s32.totalorder %s49, %s50
      %p61 = scmp.eq.s32.totalorder %s15, 0
      %p62 = por %p60, %p61
      %p63 = scmp.ne.s32.totalorder %s49, %s50
      %p64 = scmp.eq.s32.totalorder %s16, 1
      %p65 = por %p63, %p64
      %p67 = scmp.ne.s32.totalorder %s50, %s66
      %p68 = scmp.eq.s32.totalorder %s16, 0
      %p69 = por %p67, %p68
      %p70 = scmp.le.s32.totalorder 1, %s10
      %p71 = scmp.lt.s32.totalorder %s10, 3
      %p72 = pnand %p70, %p71
      %p73 = pneg %p72
      // Predicated region
      $region9: #{tpu_custom_call.1} parent=5 // pred_check
        _
      $region10: #{tpu_custom_call.1} parent=5 // pred_check_branch
        %75 = sbr.rel (%p72) target = $region12
      $region11: #{tpu_custom_call.1} parent=5 // pred_region
        %s76 = ssub.s32 %s10, 1
      $region12: #{tpu_custom_call.1} parent=5 // pred_fallthru
        _
      %p77 = scmp.lt.s32.totalorder %s10, 2
      // Predicated region
      $region13: #{tpu_custom_call.1} parent=5 // pred_check
        %p78 = pneg %p77
      $region14: #{tpu_custom_call.1} parent=5 // pred_check_branch
        %80 = sbr.rel (%p78) target = $region16
      $region15: #{tpu_custom_call.1} parent=5 // pred_region
        // Predicated region
        $region17: #{tpu_custom_call.1} parent=15 // pred_check
          %p81 = pneg %p30
        $region18: #{tpu_custom_call.1} parent=15 // pred_check_branch
          %83 = sbr.rel (%p81) target = $region20
        $region19: #{tpu_custom_call.1} parent=15 // pred_region
          %s84 = sand.u32 %s20, 1
          %s85 = scalar_lea.sflag [#allocation3], %s84
          %s86 = sand.u32 %s20, 1
          %s87 = smul.addr %s86, 8
          %s88 = scalar_lea.vmem [#allocation2], %s87
          %90 = vsyncadd %s85, 0
          %s91 = smul.addr %s10, 8
          %s92 = scalar_lea.hbm %s0, %s91
          %s94 = sshll.u32 %s92, 4
          %s95 = int_to_ptr.hbm [resolvable:$true] %s94
          %s96 = sshll.u32 %s88, 4
          %s97 = int_to_ptr.vmem [resolvable:$true] %s96
          %99 = dma.hbm_to_vmem [thread:$0]  %s95, 128, %s97, %s85
        $region20: #{tpu_custom_call.1} parent=15 // pred_fallthru
          _
      $region16: #{tpu_custom_call.1} parent=5 // pred_fallthru
        _
      %p100 = scmp.le.s32.totalorder 1, %s10
      %p101 = scmp.lt.s32.totalorder %s10, 3
      %p102 = pnand %p100, %p101
      %p103 = pneg %p102
      // Predicated region
      $region21: #{tpu_custom_call.1} parent=5 // pred_check
        _
      $region22: #{tpu_custom_call.1} parent=5 // pred_check_branch
        %105 = sbr.rel (%p102) target = $region24
      $region23: #{tpu_custom_call.1} parent=5 // pred_region
        %s106 = ssub.s32 %s10, 1
        %s107 = sand.u32 %s23, 1
        %s108 = scalar_lea.sflag [#allocation3], %s107
        %s109 = sand.u32 %s23, 1
        %s110 = smul.addr %s109, 8
        %s111 = scalar_lea.vmem [#allocation2], %s110
        // Predicated region
        $region25: #{tpu_custom_call.1} parent=23 // pred_check
          %p112 = pneg %p36
        $region26: #{tpu_custom_call.1} parent=23 // pred_check_branch
          %114 = sbr.rel (%p112) target = $region28
        $region27: #{tpu_custom_call.1} parent=23 // pred_region
          %116 = dma.done %s108, 128
        $region28: #{tpu_custom_call.1} parent=23 // pred_fallthru
          _
        %s117 = sand.u32 %s23, 1
        %s118 = scalar_lea.sflag [#allocation3], %s117
        %s119 = sand.u32 %s23, 1
        %s120 = smul.addr %s119, 8
        %s121 = scalar_lea.vmem [#allocation2], %s120
        %p122 = pneg %p36
        %p123 = pneg %p33
        %p124 = pneg %p62
        %p125 = pneg %p59
        %p126 = scmp.lt.s32.totalorder %s15, 1
        %s127 = scalar_select %p126, %s15, 1
        %s128 = smul.addr %s127, 4
        %s129 = smul.addr %s128, 8
        %s130 = scalar_lea.vmem %s1, %s129
        %p131 = scmp.lt.s32.totalorder %s15, 1
        %s132 = scalar_select %p131, %s15, 1
        %s133 = smul.addr %s132, 4
        %s134 = smul.addr %s133, 8
        %s135 = scalar_lea.vmem %s1, %s134
        %v136 = vld [vmem:[%s111] sm:$0xff]
        %137 = vxpose.xlu0.b32.start [1/16] %v136, 128
        %138 = vxpose.xlu0.b32.cont [2/16] 0.0, 128
        %139 = vxpose.xlu0.b32.cont [3/16] 0.0, 128
        %140 = vxpose.xlu0.b32.cont [4/16] 0.0, 128
        %141 = vxpose.xlu0.b32.cont [5/16] 0.0, 128
        %142 = vxpose.xlu0.b32.cont [6/16] 0.0, 128
        %143 = vxpose.xlu0.b32.cont [7/16] 0.0, 128
        %144 = vxpose.xlu0.b32.cont [8/16] 0.0, 128
        %145 = vxpose.xlu0.b32.cont [9/16] 0.0, 128
        %146 = vxpose.xlu0.b32.cont [10/16] 0.0, 128
        %147 = vxpose.xlu0.b32.cont [11/16] 0.0, 128
        %148 = vxpose.xlu0.b32.cont [12/16] 0.0, 128
        %149 = vxpose.xlu0.b32.cont [13/16] 0.0, 128
        %150 = vxpose.xlu0.b32.cont [14/16] 0.0, 128
        %151 = vxpose.xlu0.b32.cont [15/16] 0.0, 128
        %152 = vxpose.xlu0.b32.end [16/16] 0.0, 128
        %v153 = vpop.trf.xlu0
        %v154 = vpop.trf.xlu0
        %v155 = vpop.trf.xlu0
        %v156 = vpop.trf.xlu0
        %v157 = vpop.trf.xlu0
        %v158 = vpop.trf.xlu0
        %v159 = vpop.trf.xlu0
        %v160 = vpop.trf.xlu0
        %v161 = vpop.trf.xlu0
        %v162 = vpop.trf.xlu0
        %v163 = vpop.trf.xlu0
        %v164 = vpop.trf.xlu0
        %v165 = vpop.trf.xlu0
        %v166 = vpop.trf.xlu0
        %v167 = vpop.trf.xlu0
        %v168 = vpop.trf.xlu0
        %vm169 = vcmask 64512
        %170 = vst.msk [vmem:[%s135] sm:$0xff] %vm169, %v153
        %171 = vst.msk [vmem:[%s135 + $0x8] sm:$0xff] %vm169, %v154
        %172 = vst.msk [vmem:[%s135 + $0x10] sm:$0xff] %vm169, %v155
        %173 = vst.msk [vmem:[%s135 + $0x18] sm:$0xff] %vm169, %v156
        %p174 = scmp.lt.s32.totalorder %s15, 1
        %s175 = scalar_select %p174, %s15, 1
        %s176 = smul.addr %s175, 4
        %s177 = smul.addr %s176, 8
        %s178 = scalar_lea.vmem %s1, %s177
        // Predicated region
        $region29: #{tpu_custom_call.1} parent=23 // pred_check
          %p179 = pneg %p59
        $region30: #{tpu_custom_call.1} parent=23 // pred_check_branch
          %181 = sbr.rel (%p179) target = $region32
        $region31: #{tpu_custom_call.1} parent=23 // pred_region
          _
        $region32: #{tpu_custom_call.1} parent=23 // pred_fallthru
          _
      $region24: #{tpu_custom_call.1} parent=5 // pred_fallthru
        _
      %p182 = scmp.le.s32.totalorder 2, %s10
      // Predicated region
      $region33: #{tpu_custom_call.1} parent=5 // pred_check
        %p183 = pneg %p182
      $region34: #{tpu_custom_call.1} parent=5 // pred_check_branch
        %185 = sbr.rel (%p183) target = $region36
      $region35: #{tpu_custom_call.1} parent=5 // pred_region
        %s186 = ssub.s32 %s10, 2
        // Predicated region
        $region37: #{tpu_custom_call.1} parent=35 // pred_check
          %p187 = pneg %p65
        $region38: #{tpu_custom_call.1} parent=35 // pred_check_branch
          %189 = sbr.rel (%p187) target = $region40
        $region39: #{tpu_custom_call.1} parent=35 // pred_region
          %p190 = scmp.lt.s32.totalorder %s16, 1
          %s191 = scalar_select %p190, %s16, 1
          %s192 = smul.addr %s191, 4
          %s193 = smul.addr %s192, 8
          %s194 = scalar_lea.vmem %s1, %s193
        $region40: #{tpu_custom_call.1} parent=35 // pred_fallthru
          _
      $region36: #{tpu_custom_call.1} parent=5 // pred_fallthru
        _
    $region6: #{tpu_custom_call.1} parent=1 // loop_footer
      %s14 = sadd.s32 1, %s10
    $region7: #{tpu_custom_call.1} parent=1 // loop_footer_branch
      %9 = sbr.rel target = $region3
    $region8: #{tpu_custom_call.1} parent=1 // loop_exit
      _
    %195 = vsyncpa [#allocation3], 1
    %s196 = scalar_lea.sflag [#allocation3], 1
    %197 = vsyncpa %s196, 1

</llo_original>
